<compile_context>
chip_gen: v7x
topology: tpu7x:2x2x1
jax: 0.10.0
libtpu: 0.0.40
codegen_flags: <defaults>
</compile_context>

<pallas_src>
import functools

import jax
import jax.numpy as jnp
from jax.experimental import pallas as pl
from jax.experimental.pallas import tpu as pltpu


def _grad_loss_kernel(x_ref, out_ref, *, penalty, H, W):
    # x block: (TBC, Hp, Wp), one chunk of image planes (zero padded to tile).
    x = x_ref[...].astype(jnp.float32)
    _, Hp, Wp = x.shape

    # Neighbour values via XLU rotate (full-tile shapes, no VMEM re-alignment).
    x_h = pltpu.roll(x, Hp - 1, axis=1)   # neighbour along H
    x_w = pltpu.roll(x, Wp - 1, axis=2)   # neighbour along W

    dH = x_h - x
    dW = x_w - x
    if penalty == 'l2':
        dH = dH * dH
        dW = dW * dW
    else:
        dH = jnp.abs(dH)
        dW = jnp.abs(dW)

    # Validity masks: roll the row/col indices with the exact same roll call so
    # the pairing (i, neighbour(i)) is known regardless of rotate direction.
    # A position is valid iff the two paired indices are adjacent (excludes the
    # wrap-around pair) and both lie inside the real (unpadded) H x W region.
    row = jax.lax.broadcasted_iota(jnp.int32, (1, Hp, Wp), 1)
    col = jax.lax.broadcasted_iota(jnp.int32, (1, Hp, Wp), 2)
    row_n = pltpu.roll(row, Hp - 1, axis=1)
    col_n = pltpu.roll(col, Wp - 1, axis=2)

    valid_h = (jnp.abs(row_n - row) == 1) & (row < H) & (row_n < H) & (col < W)
    valid_w = (jnp.abs(col_n - col) == 1) & (col < W) & (col_n < W) & (row < H)

    contrib = jnp.where(valid_h, dH, 0.0) + jnp.where(valid_w, dW, 0.0)

    # Per-block, lane-dense partial sum: reduce the plane axis (pure VPU adds)
    # and the sublane axis once; the cross-block/lane reduce is done in the
    # wrapper with a single tiny XLA reduction.
    out_ref[...] = jnp.sum(contrib, axis=(0, 1))[None, None, :]


def gradient_loss_2d(x, penalty='l1', target_block_bytes=2 * 1024 * 1024):
    """Sum over batch/channel of |grad_H| + |grad_W| of an NCHW tensor."""
    B, C, H, W = x.shape
    BC = B * C
    xf = x.reshape(BC, H, W)

    # Pad to TPU-friendly tiles: H -> multiple of 8 (sublanes), W -> multiple
    # of 128 (lanes).  Zero padding is safe because the kernel masks out every
    # diff that touches a padded row/column.
    Hp = -(-H // 8) * 8
    Wp = -(-W // 128) * 128

    plane_bytes = Hp * Wp * xf.dtype.itemsize
    tbc = int(max(1, min(BC, target_block_bytes // plane_bytes)))
    # Round the plane count up to a multiple of tbc; extra all-zero planes
    # contribute exactly zero to the loss.
    BCp = -(-BC // tbc) * tbc

    pads = ((0, BCp - BC), (0, Hp - H), (0, Wp - W))
    if any(p[1] for p in pads):
        xf = jnp.pad(xf, pads)

    n_blocks = BCp // tbc

    partials = pl.pallas_call(
        functools.partial(_grad_loss_kernel, penalty=penalty, H=H, W=W),
        out_shape=jax.ShapeDtypeStruct((n_blocks, 1, Wp), jnp.float32),
        grid_spec=pltpu.PrefetchScalarGridSpec(
            num_scalar_prefetch=0,
            grid=(n_blocks,),
            in_specs=[pl.BlockSpec((tbc, Hp, Wp), lambda i: (i, 0, 0))],
            # Each step writes its own lane-dense partial -> no serial
            # accumulator, so the grid axis can run in parallel (v7x megacore).
            out_specs=pl.BlockSpec((1, 1, Wp), lambda i: (i, 0, 0)),
        ),
        compiler_params=pltpu.CompilerParams(
            dimension_semantics=("parallel",),
            vmem_limit_bytes=32 * 1024 * 1024,
        ),
    )(xf)

    return jnp.sum(partials)


def gradient_loss_2d_ref(x, penalty='l1'):
    dH = jnp.abs(x[:, :, 1:, :] - x[:, :, :-1, :])
    dW = jnp.abs(x[:, :, :, 1:] - x[:, :, :, :-1])
    if penalty == 'l2':
        dH = dH ** 2
        dW = dW ** 2
    return jnp.sum(dH) + jnp.sum(dW)


if __name__ == "__main__":
    key = jax.random.PRNGKey(0)
    x = jax.random.normal(key, (2, 4, 16, 16), dtype=jnp.float32)

    loss = gradient_loss_2d(x, penalty='l1')
    jax.block_until_ready(loss)
    ref = gradient_loss_2d_ref(x, penalty='l1')
    assert jnp.allclose(loss, ref, rtol=1e-5, atol=1e-5), (loss, ref)

    # Also exercise the l2 penalty path.
    loss2 = gradient_loss_2d(x, penalty='l2')
    jax.block_until_ready(loss2)
    ref2 = gradient_loss_2d_ref(x, penalty='l2')
    assert jnp.allclose(loss2, ref2, rtol=1e-5, atol=1e-5), (loss2, ref2)

    # Non-tile-aligned / multi-block shape to exercise padding and masking.
    x3 = jax.random.normal(jax.random.PRNGKey(1), (3, 5, 13, 37), jnp.float32)
    loss3 = gradient_loss_2d(x3, penalty='l1')
    jax.block_until_ready(loss3)
    ref3 = gradient_loss_2d_ref(x3, penalty='l1')
    assert jnp.allclose(loss3, ref3, rtol=1e-5, atol=1e-5), (loss3, ref3)

    print("KERNEL_OK")
</pallas_src>

<mosaic_0001>
module attributes {stable_mosaic.version = 11 : i64} {
  func.func @_grad_loss_kernel(%arg0: i32, %arg1: memref<8x16x128xf32, #tpu.memory_space<vmem>>, %arg2: memref<1x1x128xf32, #tpu.memory_space<vmem>>) attributes {dimension_semantics = [#tpu.dimension_semantics<parallel>], iteration_bounds = array<i64: 1>, scalar_prefetch = 0 : i64, scratch_operands = 0 : i64, tpu.core_type = #tpu.core_type<tc>, window_params = [{transform_indices = @transform_0, window_bounds = array<i64: 8, 16, 128>}, {transform_indices = @transform_1, window_bounds = array<i64: 1, 1, 128>}]} {
    %c0 = arith.constant 0 : index
    %c0_0 = arith.constant 0 : index
    %c0_1 = arith.constant 0 : index
    %0 = vector.load %arg1[%c0, %c0_0, %c0_1] : memref<8x16x128xf32, #tpu.memory_space<vmem>>, vector<8x16x128xf32>
    %c15_i32 = arith.constant 15 : i32
    %1 = tpu.dynamic_rotate %0 by %c15_i32 dim 1 : vector<8x16x128xf32>, i32 -> vector<8x16x128xf32>
    %c127_i32 = arith.constant 127 : i32
    %2 = tpu.dynamic_rotate %0 by %c127_i32 dim 2 : vector<8x16x128xf32>, i32 -> vector<8x16x128xf32>
    %3 = arith.subf %1, %0 : vector<8x16x128xf32>
    %4 = arith.subf %2, %0 : vector<8x16x128xf32>
    %5 = math.absf %3 : vector<8x16x128xf32>
    %6 = math.absf %4 : vector<8x16x128xf32>
    %7 = tpu.iota {dimensions = array<i32: 1>} : vector<1x16x128xi32>
    %8 = tpu.iota {dimensions = array<i32: 2>} : vector<1x16x128xi32>
    %c15_i32_2 = arith.constant 15 : i32
    %9 = tpu.dynamic_rotate %7 by %c15_i32_2 dim 1 : vector<1x16x128xi32>, i32 -> vector<1x16x128xi32>
    %c127_i32_3 = arith.constant 127 : i32
    %10 = tpu.dynamic_rotate %8 by %c127_i32_3 dim 2 : vector<1x16x128xi32>, i32 -> vector<1x16x128xi32>
    %11 = arith.subi %9, %7 : vector<1x16x128xi32>
    %12 = math.absi %11 : vector<1x16x128xi32>
    %c1_i32 = arith.constant 1 : i32
    %13 = vector.broadcast %c1_i32 : i32 to vector<1x16x128xi32>
    %14 = arith.cmpi eq, %12, %13 : vector<1x16x128xi32>
    %c16_i32 = arith.constant 16 : i32
    %15 = vector.broadcast %c16_i32 : i32 to vector<1x16x128xi32>
    %16 = arith.cmpi slt, %7, %15 : vector<1x16x128xi32>
    %17 = arith.andi %14, %16 : vector<1x16x128xi1>
    %c16_i32_4 = arith.constant 16 : i32
    %18 = vector.broadcast %c16_i32_4 : i32 to vector<1x16x128xi32>
    %19 = arith.cmpi slt, %9, %18 : vector<1x16x128xi32>
    %20 = arith.andi %17, %19 : vector<1x16x128xi1>
    %c16_i32_5 = arith.constant 16 : i32
    %21 = vector.broadcast %c16_i32_5 : i32 to vector<1x16x128xi32>
    %22 = arith.cmpi slt, %8, %21 : vector<1x16x128xi32>
    %23 = arith.andi %20, %22 : vector<1x16x128xi1>
    %24 = arith.subi %10, %8 : vector<1x16x128xi32>
    %25 = math.absi %24 : vector<1x16x128xi32>
    %c1_i32_6 = arith.constant 1 : i32
    %26 = vector.broadcast %c1_i32_6 : i32 to vector<1x16x128xi32>
    %27 = arith.cmpi eq, %25, %26 : vector<1x16x128xi32>
    %c16_i32_7 = arith.constant 16 : i32
    %28 = vector.broadcast %c16_i32_7 : i32 to vector<1x16x128xi32>
    %29 = arith.cmpi slt, %8, %28 : vector<1x16x128xi32>
    %30 = arith.andi %27, %29 : vector<1x16x128xi1>
    %c16_i32_8 = arith.constant 16 : i32
    %31 = vector.broadcast %c16_i32_8 : i32 to vector<1x16x128xi32>
    %32 = arith.cmpi slt, %10, %31 : vector<1x16x128xi32>
    %33 = arith.andi %30, %32 : vector<1x16x128xi1>
    %c16_i32_9 = arith.constant 16 : i32
    %34 = vector.broadcast %c16_i32_9 : i32 to vector<1x16x128xi32>
    %35 = arith.cmpi slt, %7, %34 : vector<1x16x128xi32>
    %36 = arith.andi %33, %35 : vector<1x16x128xi1>
    %cst = arith.constant 0.000000e+00 : f32
    %37 = vector.shape_cast %23 : vector<1x16x128xi1> to vector<1x16x128xi1>
    %38 = vector.broadcast %37 : vector<1x16x128xi1> to vector<8x16x128xi1>
    %39 = vector.broadcast %cst : f32 to vector<8x16x128xf32>
    %40 = arith.select %38, %5, %39 : vector<8x16x128xi1>, vector<8x16x128xf32>
    %cst_10 = arith.constant 0.000000e+00 : f32
    %41 = vector.shape_cast %36 : vector<1x16x128xi1> to vector<1x16x128xi1>
    %42 = vector.broadcast %41 : vector<1x16x128xi1> to vector<8x16x128xi1>
    %43 = vector.broadcast %cst_10 : f32 to vector<8x16x128xf32>
    %44 = arith.select %42, %6, %43 : vector<8x16x128xi1>, vector<8x16x128xf32>
    %45 = arith.addf %40, %44 : vector<8x16x128xf32>
    %cst_11 = arith.constant dense<0.000000e+00> : vector<128xf32>
    %46 = vector.multi_reduction <add>, %45, %cst_11 [0, 1] : vector<8x16x128xf32> to vector<128xf32>
    %47 = vector.shape_cast %46 : vector<128xf32> to vector<1x1x128xf32>
    %c0_12 = arith.constant 0 : index
    %c0_13 = arith.constant 0 : index
    %c0_14 = arith.constant 0 : index
    %48 = vector.load %arg2[%c0_12, %c0_13, %c0_14] : memref<1x1x128xf32, #tpu.memory_space<vmem>>, vector<1x1x128xf32>
    tpu.vector_store %arg2[%c0_12, %c0_13, %c0_14], %47 {strides = array<i32>} : memref<1x1x128xf32, #tpu.memory_space<vmem>>, vector<1x1x128xf32>,
    return
  }
  func.func @transform_0(%arg0: i32) -> (i32, i32, i32) {
    %c0_i32 = arith.constant 0 : i32
    %c0_i32_0 = arith.constant 0 : i32
    %c0_i32_1 = arith.constant 0 : i32
    return %arg0, %c0_i32, %c0_i32_0 : i32, i32, i32
  }
  func.func @transform_1(%arg0: i32) -> (i32, i32, i32) {
    %c0_i32 = arith.constant 0 : i32
    %c0_i32_0 = arith.constant 0 : i32
    %c0_i32_1 = arith.constant 0 : i32
    return %arg0, %c0_i32, %c0_i32_0 : i32, i32, i32
  }
}

</mosaic_0001>

<llo_original>
// kernel: tpu_custom_call.1
$region0: #{tpu_custom_call.1}
  #allocation0 [shape = 'u32[]', space=smem, size = 0x4, offset = 0x4, fixed_abs, tag = 'smem constant byte address 0x4 - core index']
  #allocation1 [shape = 'u32[144,128]{1,0:T(1,128)}', space=vmem, size = 0x12000, scoped, tag = 'internal scratch']
  %s0 = inlined_call_operand.hbm [shape: f32[8,16,128], index: 0, kind: input, shape index: {}]
  %s1 = inlined_call_operand.hbm [shape: f32[1,1,128], index: 1, kind: output, shape index: {}]
  %s2 = sld [smem:[#allocation0]]
  $region18: #{tpu_custom_call.1} parent=0
    _
  %s4 = ssub.s32 1, %s2
  %s5 = scalar_select 0, %s4, %s2
  $region1: #{tpu_custom_call.1} parent=0
    #allocation2 [shape = 'u8[65536]{0}', space=vmem, size = 0x10000, scoped, tag = 'input window, operand 0, single buffered']
    #allocation3 [shape = 's32[1]{0}', space=sflag, size = 0x4, scoped, tag = 'scoped memory for tpu_custom_call.1']
    #allocation4 [shape = 's32[1]{0}', space=sflag, size = 0x4, scoped, tag = 'scoped memory for tpu_custom_call.1']
    #allocation5 [shape = 'u8[512]{0}', space=vmem, size = 0x400, scoped, tag = 'output window, operand 0, single buffered']
    %6 = vsyncpa [#allocation3], 0
    %7 = vsyncpa [#allocation4], 0
    // Predicated region
    $region2: #{tpu_custom_call.1} parent=1 // pred_check
      _
    $region3: #{tpu_custom_call.1} parent=1 // pred_check_branch
      %9 = sbr.rel (0) target = $region5
    $region4: #{tpu_custom_call.1} parent=1 // pred_region
      %s11 = ssub.s32 2048, 2048
      %12 = vsyncadd [#allocation3], %s11
      %s13 = sshll.u32 [#allocation2], 4
      %s14 = int_to_ptr.vmem [resolvable:$true] %s13
      %19 = dma.hbm_to_vmem [thread:$0]  %s0, 2048, %s14, [#allocation3], 128, 128, 8
    $region5: #{tpu_custom_call.1} parent=1 // pred_fallthru
      _
    // Predicated region
    $region6: #{tpu_custom_call.1} parent=1 // pred_check
      _
    $region7: #{tpu_custom_call.1} parent=1 // pred_check_branch
      %21 = sbr.rel (0) target = $region9
    $region8: #{tpu_custom_call.1} parent=1 // pred_region
      %22 = dma.done [#allocation3], 2048
    $region9: #{tpu_custom_call.1} parent=1 // pred_fallthru
      _
    %v23 = vld [vmem:[#allocation2] sm:$0xff]
    %v24 = vld [vmem:[#allocation2 + $0x8] sm:$0xff]
    %v25 = vld [vmem:[#allocation2 + $0x10] sm:$0xff]
    %v26 = vld [vmem:[#allocation2 + $0x18] sm:$0xff]
    %v27 = vld [vmem:[#allocation2 + $0x20] sm:$0xff]
    %v28 = vld [vmem:[#allocation2 + $0x28] sm:$0xff]
    %v29 = vld [vmem:[#allocation2 + $0x30] sm:$0xff]
    %v30 = vld [vmem:[#allocation2 + $0x38] sm:$0xff]
    %v31 = vld [vmem:[#allocation2 + $0x40] sm:$0xff]
    %v32 = vld [vmem:[#allocation2 + $0x48] sm:$0xff]
    %v33 = vld [vmem:[#allocation2 + $0x50] sm:$0xff]
    %v34 = vld [vmem:[#allocation2 + $0x58] sm:$0xff]
    %v35 = vld [vmem:[#allocation2 + $0x60] sm:$0xff]
    %v36 = vld [vmem:[#allocation2 + $0x68] sm:$0xff]
    %v37 = vld [vmem:[#allocation2 + $0x70] sm:$0xff]
    %v38 = vld [vmem:[#allocation2 + $0x78] sm:$0xff]
    %v39 = vrot.slane %v23, 1
    %v40 = vrot.slane %v25, 1
    %v41 = vrot.slane %v27, 1
    %v42 = vrot.slane %v29, 1
    %v43 = vrot.slane %v31, 1
    %v44 = vrot.slane %v33, 1
    %v45 = vrot.slane %v35, 1
    %v46 = vrot.slane %v37, 1
    %v47 = vrot.slane %v24, 1
    %v48 = vrot.slane %v26, 1
    %v49 = vrot.slane %v28, 1
    %v50 = vrot.slane %v30, 1
    %v51 = vrot.slane %v32, 1
    %v52 = vrot.slane %v34, 1
    %v53 = vrot.slane %v36, 1
    %v54 = vrot.slane %v38, 1
    %v55 = vlaneseq
    %v56 = vshrl.u32 %v55, 7
    %vm57 = vcmp.lt.s32.totalorder %v56, 7
    %v58 = vsel %vm57, %v39, %v47
    %v59 = vsel %vm57, %v40, %v48
    %v60 = vsel %vm57, %v41, %v49
    %v61 = vsel %vm57, %v42, %v50
    %v62 = vsel %vm57, %v43, %v51
    %v63 = vsel %vm57, %v44, %v52
    %v64 = vsel %vm57, %v45, %v53
    %v65 = vsel %vm57, %v46, %v54
    %v66 = vsel %vm57, %v47, %v39
    %v67 = vsel %vm57, %v48, %v40
    %v68 = vsel %vm57, %v49, %v41
    %v69 = vsel %vm57, %v50, %v42
    %v70 = vsel %vm57, %v51, %v43
    %v71 = vsel %vm57, %v52, %v44
    %v72 = vsel %vm57, %v53, %v45
    %v73 = vsel %vm57, %v54, %v46
    %74 = vrot.lane.b32.xlu0 %v23, 127
    %v75 = vpop.permute.xlu0 %74
    %76 = vrot.lane.b32.xlu0 %v24, 127
    %v77 = vpop.permute.xlu0 %76
    %78 = vrot.lane.b32.xlu0 %v25, 127
    %v79 = vpop.permute.xlu0 %78
    %80 = vrot.lane.b32.xlu0 %v26, 127
    %v81 = vpop.permute.xlu0 %80
    %82 = vrot.lane.b32.xlu0 %v27, 127
    %v83 = vpop.permute.xlu0 %82
    %84 = vrot.lane.b32.xlu0 %v28, 127
    %v85 = vpop.permute.xlu0 %84
    %86 = vrot.lane.b32.xlu0 %v29, 127
    %v87 = vpop.permute.xlu0 %86
    %88 = vrot.lane.b32.xlu0 %v30, 127
    %v89 = vpop.permute.xlu0 %88
    %90 = vrot.lane.b32.xlu0 %v31, 127
    %v91 = vpop.permute.xlu0 %90
    %92 = vrot.lane.b32.xlu0 %v32, 127
    %v93 = vpop.permute.xlu0 %92
    %94 = vrot.lane.b32.xlu0 %v33, 127
    %v95 = vpop.permute.xlu0 %94
    %96 = vrot.lane.b32.xlu0 %v34, 127
    %v97 = vpop.permute.xlu0 %96
    %98 = vrot.lane.b32.xlu0 %v35, 127
    %v99 = vpop.permute.xlu0 %98
    %100 = vrot.lane.b32.xlu0 %v36, 127
    %v101 = vpop.permute.xlu0 %100
    %102 = vrot.lane.b32.xlu0 %v37, 127
    %v103 = vpop.permute.xlu0 %102
    %104 = vrot.lane.b32.xlu0 %v38, 127
    %v105 = vpop.permute.xlu0 %104
    %v106 = vsub.f32 %v58, %v23
    %v107 = vsub.f32 %v66, %v24
    %v108 = vsub.f32 %v59, %v25
    %v109 = vsub.f32 %v67, %v26
    %v110 = vsub.f32 %v60, %v27
    %v111 = vsub.f32 %v68, %v28
    %v112 = vsub.f32 %v61, %v29
    %v113 = vsub.f32 %v69, %v30
    %v114 = vsub.f32 %v62, %v31
    %v115 = vsub.f32 %v70, %v32
    %v116 = vsub.f32 %v63, %v33
    %v117 = vsub.f32 %v71, %v34
    %v118 = vsub.f32 %v64, %v35
    %v119 = vsub.f32 %v72, %v36
    %v120 = vsub.f32 %v65, %v37
    %v121 = vsub.f32 %v73, %v38
    %v122 = vsub.f32 %v75, %v23
    %v123 = vsub.f32 %v77, %v24
    %v124 = vsub.f32 %v79, %v25
    %v125 = vsub.f32 %v81, %v26
    %v126 = vsub.f32 %v83, %v27
    %v127 = vsub.f32 %v85, %v28
    %v128 = vsub.f32 %v87, %v29
    %v129 = vsub.f32 %v89, %v30
    %v130 = vsub.f32 %v91, %v31
    %v131 = vsub.f32 %v93, %v32
    %v132 = vsub.f32 %v95, %v33
    %v133 = vsub.f32 %v97, %v34
    %v134 = vsub.f32 %v99, %v35
    %v135 = vsub.f32 %v101, %v36
    %v136 = vsub.f32 %v103, %v37
    %v137 = vsub.f32 %v105, %v38
    %v138 = vand.u32 2147483647, %v106
    %v139 = vand.u32 2147483647, %v107
    %v140 = vand.u32 2147483647, %v108
    %v141 = vand.u32 2147483647, %v109
    %v142 = vand.u32 2147483647, %v110
    %v143 = vand.u32 2147483647, %v111
    %v144 = vand.u32 2147483647, %v112
    %v145 = vand.u32 2147483647, %v113
    %v146 = vand.u32 2147483647, %v114
    %v147 = vand.u32 2147483647, %v115
    %v148 = vand.u32 2147483647, %v116
    %v149 = vand.u32 2147483647, %v117
    %v150 = vand.u32 2147483647, %v118
    %v151 = vand.u32 2147483647, %v119
    %v152 = vand.u32 2147483647, %v120
    %v153 = vand.u32 2147483647, %v121
    %v154 = vand.u32 2147483647, %v122
    %v155 = vand.u32 2147483647, %v123
    %v156 = vand.u32 2147483647, %v124
    %v157 = vand.u32 2147483647, %v125
    %v158 = vand.u32 2147483647, %v126
    %v159 = vand.u32 2147483647, %v127
    %v160 = vand.u32 2147483647, %v128
    %v161 = vand.u32 2147483647, %v129
    %v162 = vand.u32 2147483647, %v130
    %v163 = vand.u32 2147483647, %v131
    %v164 = vand.u32 2147483647, %v132
    %v165 = vand.u32 2147483647, %v133
    %v166 = vand.u32 2147483647, %v134
    %v167 = vand.u32 2147483647, %v135
    %v168 = vand.u32 2147483647, %v136
    %v169 = vand.u32 2147483647, %v137
    %v170 = vadd.s32 %v56, 8
    %v171 = vlaneseq
    %v172 = vand.u32 %v171, 127
    %v173 = vrot.slane %v56, 1
    %v174 = vrot.slane %v170, 1
    %v175 = vsel %vm57, %v173, %v174
    %v176 = vsel %vm57, %v174, %v173
    %177 = vrot.lane.b32.xlu0 %v172, 127
    %v178 = vpop.permute.xlu0 %177
    %v179 = vsub.s32 %v175, %v56
    %v180 = vsub.s32 %v176, %v170
    %vm181 = vcmp.lt.s32.totalorder %v179, 0
    %v182 = vsub.s32 0, %v179
    %v183 = vsel %vm181, %v182, %v179
    %vm184 = vcmp.lt.s32.totalorder %v180, 0
    %v185 = vsub.s32 0, %v180
    %v186 = vsel %vm184, %v185, %v180
    %vm187 = vcmp.eq.s32.totalorder %v183, 1
    %vm188 = vcmp.eq.s32.totalorder %v186, 1
    %vm189 = vcmp.lt.s32.totalorder %v56, 16
    %vm190 = vcmp.lt.s32.totalorder %v170, 16
    %vm191 = vmand %vm187, %vm189
    %vm192 = vmand %vm188, %vm190
    %vm193 = vcmp.lt.s32.totalorder %v175, 16
    %vm194 = vcmp.lt.s32.totalorder %v176, 16
    %vm195 = vmand %vm191, %vm193
    %vm196 = vmand %vm192, %vm194
    %vm197 = vcmp.lt.s32.totalorder %v172, 16
    %vm198 = vmand %vm195, %vm197
    %vm199 = vmand %vm196, %vm197
    %v200 = vsub.s32 %v178, %v172
    %vm201 = vcmp.lt.s32.totalorder %v200, 0
    %v202 = vsub.s32 0, %v200
    %v203 = vsel %vm201, %v202, %v200
    %vm204 = vcmp.eq.s32.totalorder %v203, 1
    %vm205 = vmand %vm204, %vm197
    %vm206 = vcmp.lt.s32.totalorder %v178, 16
    %vm207 = vmand %vm205, %vm206
    %vm208 = vmand %vm207, %vm189
    %vm209 = vmand %vm207, %vm190
    %v210 = vsel %vm198, 1, 0
    %v211 = vsel %vm199, 1, 0
    %vm212 = vcmp.eq.s32.totalorder %v210, 1
    %vm213 = vcmp.eq.s32.totalorder %v211, 1
    %v214 = vsel %vm212, %v138, 0.0
    %v215 = vsel %vm213, %v139, 0.0
    %v216 = vsel %vm212, %v140, 0.0
    %v217 = vsel %vm213, %v141, 0.0
    %v218 = vsel %vm212, %v142, 0.0
    %v219 = vsel %vm213, %v143, 0.0
    %v220 = vsel %vm212, %v144, 0.0
    %v221 = vsel %vm213, %v145, 0.0
    %v222 = vsel %vm212, %v146, 0.0
    %v223 = vsel %vm213, %v147, 0.0
    %v224 = vsel %vm212, %v148, 0.0
    %v225 = vsel %vm213, %v149, 0.0
    %v226 = vsel %vm212, %v150, 0.0
    %v227 = vsel %vm213, %v151, 0.0
    %v228 = vsel %vm212, %v152, 0.0
    %v229 = vsel %vm213, %v153, 0.0
    %v230 = vsel %vm208, 1, 0
    %v231 = vsel %vm209, 1, 0
    %vm232 = vcmp.eq.s32.totalorder %v230, 1
    %vm233 = vcmp.eq.s32.totalorder %v231, 1
    %v234 = vsel %vm232, %v154, 0.0
    %v235 = vsel %vm233, %v155, 0.0
    %v236 = vsel %vm232, %v156, 0.0
    %v237 = vsel %vm233, %v157, 0.0
    %v238 = vsel %vm232, %v158, 0.0
    %v239 = vsel %vm233, %v159, 0.0
    %v240 = vsel %vm232, %v160, 0.0
    %v241 = vsel %vm233, %v161, 0.0
    %v242 = vsel %vm232, %v162, 0.0
    %v243 = vsel %vm233, %v163, 0.0
    %v244 = vsel %vm232, %v164, 0.0
    %v245 = vsel %vm233, %v165, 0.0
    %v246 = vsel %vm232, %v166, 0.0
    %v247 = vsel %vm233, %v167, 0.0
    %v248 = vsel %vm232, %v168, 0.0
    %v249 = vsel %vm233, %v169, 0.0
    %v250 = vadd.f32 %v214, %v234
    %v251 = vadd.f32 %v215, %v235
    %v252 = vadd.f32 %v216, %v236
    %v253 = vadd.f32 %v217, %v237
    %v254 = vadd.f32 %v218, %v238
    %v255 = vadd.f32 %v219, %v239
    %v256 = vadd.f32 %v220, %v240
    %v257 = vadd.f32 %v221, %v241
    %v258 = vadd.f32 %v222, %v242
    %v259 = vadd.f32 %v223, %v243
    %v260 = vadd.f32 %v224, %v244
    %v261 = vadd.f32 %v225, %v245
    %v262 = vadd.f32 %v226, %v246
    %v263 = vadd.f32 %v227, %v247
    %v264 = vadd.f32 %v228, %v248
    %v265 = vadd.f32 %v229, %v249
    %v266 = vadd.f32 %v250, %v251
    %v267 = vadd.f32 %v266, %v252
    %v268 = vadd.f32 %v267, %v253
    %v269 = vadd.f32 %v268, %v254
    %v270 = vadd.f32 %v269, %v255
    %v271 = vadd.f32 %v270, %v256
    %v272 = vadd.f32 %v271, %v257
    %v273 = vadd.f32 %v272, %v258
    %v274 = vadd.f32 %v273, %v259
    %v275 = vadd.f32 %v274, %v260
    %v276 = vadd.f32 %v275, %v261
    %v277 = vadd.f32 %v276, %v262
    %v278 = vadd.f32 %v277, %v263
    %v279 = vadd.f32 %v278, %v264
    %v280 = vadd.f32 %v279, %v265
    %v281 = vrot.slane %v280, 4
    %v282 = vadd.f32 %v280, %v281
    %v283 = vrot.slane %v282, 2
    %v284 = vadd.f32 %v282, %v283
    %v285 = vrot.slane %v284, 1
    %v286 = vadd.f32 %v284, %v285
    %287 = vst [vmem:[#allocation5] sm:$0x1] %v286
    // Predicated region
    $region10: #{tpu_custom_call.1} parent=1 // pred_check
      _
    $region11: #{tpu_custom_call.1} parent=1 // pred_check_branch
      %289 = sbr.rel (0) target = $region13
    $region12: #{tpu_custom_call.1} parent=1 // pred_region
      %s291 = ssub.s32 16, 16
      %292 = vsyncadd [#allocation4], %s291
      %s294 = sshll.u32 [#allocation5], 4
      %s295 = int_to_ptr.vmem [resolvable:$true] %s294
      %297 = dma.vmem_to_hbm [thread:$0]  %s295, 16, %s1, [#allocation4]
    $region13: #{tpu_custom_call.1} parent=1 // pred_fallthru
      _
    // Predicated region
    $region14: #{tpu_custom_call.1} parent=1 // pred_check
      _
    $region15: #{tpu_custom_call.1} parent=1 // pred_check_branch
      %299 = sbr.rel (0) target = $region17
    $region16: #{tpu_custom_call.1} parent=1 // pred_region
      %300 = dma.done [#allocation4], 16
    $region17: #{tpu_custom_call.1} parent=1 // pred_fallthru
      _
    %301 = vsyncpa [#allocation3], 1
    %302 = vsyncpa [#allocation4], 1

</llo_original>
